<compile_context>
chip_gen: v5e
topology: v5e:2x2
jax: 0.10.0
libtpu: 0.0.40
codegen_flags: <defaults>
</compile_context>

<pallas_src>
import jax
import jax.numpy as jnp
import numpy as np
from jax.experimental import pallas as pl
from jax.experimental.pallas import tpu as pltpu


def _sigmoid(v):
    return 1.0 / (1.0 + jnp.exp(-v))


def _yolo_kernel(x_ref, o_ref):
    """x_ref/o_ref: (1, C, BHW) block — channels on sublanes, H*W on lanes."""
    x = x_ref[0]                                               # (C, BHW)
    ch = jax.lax.broadcasted_iota(jnp.int32, x.shape, 0)        # channel index per row
    o_ref[0] = jnp.where(ch < 3, _sigmoid(x), x)


def _pick_block_hw(hw, max_block=4096):
    """Largest lane-dense block along H*W that evenly divides it (or the full extent)."""
    if hw <= max_block:
        return hw
    b = (max_block // 128) * 128
    while b >= 128:
        if hw % b == 0:
            return b
        b -= 128
    return hw  # fallback: full extent (always a legal block)


def yolo_block_pallas(x_nchw):
    """x_nchw: (N, C, H, W) -> (N, H, W, C) with sigmoid on channels 0..2."""
    N, C, H, W = x_nchw.shape
    HW = H * W
    bhw = _pick_block_hw(HW)
    grid = (N, HW // bhw)

    x_flat = x_nchw.reshape(N, C, HW)                           # lane-dense: HW on lanes

    out_flat = pl.pallas_call(
        _yolo_kernel,
        out_shape=jax.ShapeDtypeStruct((N, C, HW), x_nchw.dtype),
        grid=grid,
        in_specs=[pl.BlockSpec((1, C, bhw), lambda n, j: (n, 0, j))],
        out_specs=pl.BlockSpec((1, C, bhw), lambda n, j: (n, 0, j)),
        compiler_params=pltpu.CompilerParams(
            dimension_semantics=("parallel", "parallel")),
    )(x_flat)

    # layout plumbing back to the module's NHWC output (done by XLA, not in-kernel)
    return jnp.transpose(out_flat.reshape(N, C, H, W), (0, 2, 3, 1))


def yolo_block_ref(x_nchw):
    """Pure-JAX reference mirroring the PyTorch module."""
    p = jnp.transpose(x_nchw, (0, 2, 3, 1))                     # NCHW -> NHWC
    return p.at[..., 0:3].set(jax.nn.sigmoid(p[..., 0:3]))


if __name__ == "__main__":
    # small shapes consistent with the module: C >= 3 (sigmoid on channels 0..2)
    N, C, H, W = 2, 4, 16, 16
    key = jax.random.PRNGKey(0)
    x = jax.random.normal(key, (N, C, H, W), jnp.float32) * 2.0

    out = jax.block_until_ready(yolo_block_pallas(x))
    ref = jax.block_until_ready(yolo_block_ref(x))

    assert out.shape == (N, H, W, C)
    np.testing.assert_allclose(np.asarray(out), np.asarray(ref), rtol=1e-5, atol=1e-5)
    print("KERNEL_OK")
</pallas_src>

<mosaic_0001>
module attributes {stable_mosaic.version = 11 : i64} {
  func.func @_yolo_kernel(%arg0: i32, %arg1: i32, %arg2: memref<1x4x256xf32, #tpu.memory_space<vmem>>, %arg3: memref<1x4x256xf32, #tpu.memory_space<vmem>>) attributes {dimension_semantics = [#tpu.dimension_semantics<parallel>, #tpu.dimension_semantics<parallel>], iteration_bounds = array<i64: 2, 1>, scalar_prefetch = 0 : i64, scratch_operands = 0 : i64, tpu.core_type = #tpu.core_type<tc>, window_params = [{transform_indices = @transform_0, window_bounds = array<i64: 1, 4, 256>}, {transform_indices = @transform_1, window_bounds = array<i64: 1, 4, 256>}]} {
    %c0 = arith.constant 0 : index
    %c0_0 = arith.constant 0 : index
    %c0_1 = arith.constant 0 : index
    %0 = vector.load %arg2[%c0, %c0_0, %c0_1] : memref<1x4x256xf32, #tpu.memory_space<vmem>>, vector<1x4x256xf32>
    %1 = vector.shape_cast %0 : vector<1x4x256xf32> to vector<4x256xf32>
    %2 = tpu.iota {dimensions = array<i32: 0>} : vector<4x256xi32>
    %c3_i32 = arith.constant 3 : i32
    %3 = vector.broadcast %c3_i32 : i32 to vector<4x256xi32>
    %4 = arith.cmpi slt, %2, %3 : vector<4x256xi32>
    %cst = arith.constant 0.000000e+00 : f32
    %5 = vector.broadcast %cst : f32 to vector<4x256xf32>
    %6 = arith.subf %5, %1 : vector<4x256xf32>
    %7 = math.exp %6 : vector<4x256xf32>
    %cst_2 = arith.constant 1.000000e+00 : f32
    %8 = vector.broadcast %cst_2 : f32 to vector<4x256xf32>
    %9 = arith.addf %8, %7 : vector<4x256xf32>
    %cst_3 = arith.constant 1.000000e+00 : f32
    %10 = vector.broadcast %cst_3 : f32 to vector<4x256xf32>
    %11 = arith.divf %10, %9 : vector<4x256xf32>
    %12 = arith.select %4, %11, %1 : vector<4x256xi1>, vector<4x256xf32>
    %c0_4 = arith.constant 0 : index
    %c0_5 = arith.constant 0 : index
    %c0_6 = arith.constant 0 : index
    %13 = vector.load %arg3[%c0_4, %c0_5, %c0_6] : memref<1x4x256xf32, #tpu.memory_space<vmem>>, vector<1x4x256xf32>
    %14 = vector.shape_cast %13 : vector<1x4x256xf32> to vector<4x256xf32>
    %15 = vector.shape_cast %12 : vector<4x256xf32> to vector<1x4x256xf32>
    tpu.vector_store %arg3[%c0_4, %c0_5, %c0_6], %15 {strides = array<i32>} : memref<1x4x256xf32, #tpu.memory_space<vmem>>, vector<1x4x256xf32>,
    return
  }
  func.func @transform_0(%arg0: i32, %arg1: i32) -> (i32, i32, i32) {
    %c0_i32 = arith.constant 0 : i32
    %c0_i32_0 = arith.constant 0 : i32
    return %arg0, %c0_i32, %arg1 : i32, i32, i32
  }
  func.func @transform_1(%arg0: i32, %arg1: i32) -> (i32, i32, i32) {
    %c0_i32 = arith.constant 0 : i32
    %c0_i32_0 = arith.constant 0 : i32
    return %arg0, %c0_i32, %arg1 : i32, i32, i32
  }
}

</mosaic_0001>

<llo_original>
// kernel: tpu_custom_call.1
$region0: #{tpu_custom_call.1}
  #allocation0 [shape = 'u32[]', space=smem, size = 0x4, offset = 0x4, fixed_abs, tag = 'smem constant byte address 0x4 - core index']
  #allocation1 [shape = 'u32[72,128]{1,0:T(1,128)}', space=vmem, size = 0x9000, scoped, tag = 'internal scratch']
  %s0 = inlined_call_operand.hbm [shape: f32[2,4,256], index: 0, kind: input, shape index: {}]
  %s1 = inlined_call_operand.hbm [shape: f32[2,4,256], index: 1, kind: output, shape index: {}]
  %s2 = sld [smem:[#allocation0]]
  $region41: #{tpu_custom_call.1} parent=0
    _
  %s4 = ssub.s32 1, %s2
  %s5 = scalar_select 0, %s4, %s2
  $region1: #{tpu_custom_call.1} parent=0
    #allocation2 [shape = 'u8[8192]{0}', space=vmem, size = 0x2000, scoped, tag = 'input window, operand 0']
    #allocation3 [shape = 's32[2]{0}', space=sflag, size = 0x8, scoped, tag = 'scoped memory for tpu_custom_call.1']
    #allocation4 [shape = 's32[2]{0}', space=sflag, size = 0x8, scoped, tag = 'scoped memory for tpu_custom_call.1']
    #allocation5 [shape = 'u8[8192]{0}', space=vmem, size = 0x2000, scoped, tag = 'output window, operand 0']
    %6 = vsyncpa [#allocation3], 0
    %s7 = scalar_lea.sflag [#allocation3], 1
    %8 = vsyncpa %s7, 0
    %9 = vsyncpa [#allocation4], 0
    %s10 = scalar_lea.sflag [#allocation4], 1
    %11 = vsyncpa %s10, 0
    loop: start=0, step=1, limit=4
    $region2: #{tpu_custom_call.1} parent=1 // loop_pre_header
      _
    $region3: #{tpu_custom_call.1} parent=1 // loop_header
      %s13 = sphi 0, %s17
      %p14 = scmp.ge.s32.totalorder %s13, 4
      %s20 = sphi 0, %s32
      %s21 = sphi 0, %s28
      %s22 = sphi 0, %s20
      %s23 = sphi 0, %s21
      %s24 = sphi 0, %s22
      %s25 = sphi 0, %s23
      %s37 = sphi 0, %s39
      %s40 = sphi 0, %s37
      %s41 = sphi 0, %s40
      %s57 = sphi 0, %s41
      %s65 = sphi 0, %s67
      %s68 = sphi 0, %s65
      %s69 = sphi 0, %s68
      %s85 = sphi 0, %s69
    $region4: #{tpu_custom_call.1} parent=1 // loop_header_branch
      %16 = sbr.rel (%p14) target = $region8
    $region5: #{tpu_custom_call.1} parent=1 // loop_body
      %s18 = ssub.s32 %s13, 1
      %s19 = ssub.s32 %s13, 2
      %s26 = sadd.s32 1, %s21
      %p27 = scmp.ge.s32.totalorder %s26, 1
      %s28 = scalar_select %p27, 0, %s26
      %s29 = sadd.s32 1, %s20
      %s30 = scalar_select %p27, %s29, %s20
      %p31 = scmp.ge.s32.totalorder %s30, 2
      %s32 = scalar_select %p31, 0, %s30
      %s33 = ssub.s32 %s20, %s32
      %s34 = ssub.s32 %s21, %s28
      %s35 = sor.u32 %s33, %s34
      %p36 = scmp.eq.s32.totalorder %s35, 0
      %s38 = sadd.s32 %s37, 1
      %s39 = scalar_select %p36, %s37, %s38
      %p42 = pneg %p36
      %p43 = scmp.eq.s32.totalorder %s13, 1
      %p44 = por %p42, %p43
      %p45 = scmp.ne.s32.totalorder %s37, %s40
      %p46 = scmp.eq.s32.totalorder %s13, 0
      %p47 = por %p45, %p46
      %p48 = scmp.ne.s32.totalorder %s37, %s40
      %p49 = scmp.eq.s32.totalorder %s18, 1
      %p50 = por %p48, %p49
      %p51 = scmp.ne.s32.totalorder %s40, %s41
      %p52 = scmp.eq.s32.totalorder %s18, 0
      %p53 = por %p51, %p52
      %p54 = scmp.ne.s32.totalorder %s40, %s41
      %p55 = scmp.eq.s32.totalorder %s19, 1
      %p56 = por %p54, %p55
      %p58 = scmp.ne.s32.totalorder %s41, %s57
      %p59 = scmp.eq.s32.totalorder %s19, 0
      %p60 = por %p58, %p59
      %s61 = ssub.s32 %s20, %s32
      %s62 = ssub.s32 %s21, %s28
      %s63 = sor.u32 %s61, %s62
      %p64 = scmp.eq.s32.totalorder %s63, 0
      %s66 = sadd.s32 %s65, 1
      %s67 = scalar_select %p64, %s65, %s66
      %p70 = pneg %p64
      %p71 = scmp.eq.s32.totalorder %s13, 1
      %p72 = por %p70, %p71
      %p73 = scmp.ne.s32.totalorder %s65, %s68
      %p74 = scmp.eq.s32.totalorder %s13, 0
      %p75 = por %p73, %p74
      %p76 = scmp.ne.s32.totalorder %s65, %s68
      %p77 = scmp.eq.s32.totalorder %s18, 1
      %p78 = por %p76, %p77
      %p79 = scmp.ne.s32.totalorder %s68, %s69
      %p80 = scmp.eq.s32.totalorder %s18, 0
      %p81 = por %p79, %p80
      %p82 = scmp.ne.s32.totalorder %s68, %s69
      %p83 = scmp.eq.s32.totalorder %s19, 1
      %p84 = por %p82, %p83
      %p86 = scmp.ne.s32.totalorder %s69, %s85
      %p87 = scmp.eq.s32.totalorder %s19, 0
      %p88 = por %p86, %p87
      %p89 = scmp.le.s32.totalorder 1, %s13
      %p90 = scmp.lt.s32.totalorder %s13, 3
      %p91 = pnand %p89, %p90
      %p92 = pneg %p91
      // Predicated region
      $region9: #{tpu_custom_call.1} parent=5 // pred_check
        _
      $region10: #{tpu_custom_call.1} parent=5 // pred_check_branch
        %94 = sbr.rel (%p91) target = $region12
      $region11: #{tpu_custom_call.1} parent=5 // pred_region
        %s95 = ssub.s32 %s13, 1
      $region12: #{tpu_custom_call.1} parent=5 // pred_fallthru
        _
      %p96 = scmp.lt.s32.totalorder %s13, 2
      // Predicated region
      $region13: #{tpu_custom_call.1} parent=5 // pred_check
        %p97 = pneg %p96
      $region14: #{tpu_custom_call.1} parent=5 // pred_check_branch
        %99 = sbr.rel (%p97) target = $region16
      $region15: #{tpu_custom_call.1} parent=5 // pred_region
        // Predicated region
        $region17: #{tpu_custom_call.1} parent=15 // pred_check
          %p100 = pneg %p47
        $region18: #{tpu_custom_call.1} parent=15 // pred_check_branch
          %102 = sbr.rel (%p100) target = $region20
        $region19: #{tpu_custom_call.1} parent=15 // pred_region
          %s103 = sand.u32 %s37, 1
          %s104 = scalar_lea.sflag [#allocation3], %s103
          %s105 = sand.u32 %s37, 1
          %s106 = smul.addr %s105, 8
          %s107 = scalar_lea.vmem [#allocation2], %s106
          %s108 = smul.u32 2, %s21
          %110 = vsyncadd %s104, 0
          %s111 = smul.addr %s20, 2
          %s112 = sadd.s32 %s108, %s111
          %s113 = smul.addr %s112, 4
          %s114 = scalar_lea.hbm %s0, %s113
          %s116 = sshll.u32 %s114, 4
          %s117 = int_to_ptr.hbm [resolvable:$true] %s116
          %s118 = sshll.u32 %s107, 4
          %s119 = int_to_ptr.vmem [resolvable:$true] %s118
          %121 = dma.hbm_to_vmem [thread:$0]  %s117, 128, %s119, %s104
        $region20: #{tpu_custom_call.1} parent=15 // pred_fallthru
          _
      $region16: #{tpu_custom_call.1} parent=5 // pred_fallthru
        _
      %p122 = scmp.le.s32.totalorder 1, %s13
      %p123 = scmp.lt.s32.totalorder %s13, 3
      %p124 = pnand %p122, %p123
      %p125 = pneg %p124
      // Predicated region
      $region21: #{tpu_custom_call.1} parent=5 // pred_check
        _
      $region22: #{tpu_custom_call.1} parent=5 // pred_check_branch
        %127 = sbr.rel (%p124) target = $region24
      $region23: #{tpu_custom_call.1} parent=5 // pred_region
        %s128 = ssub.s32 %s13, 1
        %s129 = sand.u32 %s40, 1
        %s130 = scalar_lea.sflag [#allocation3], %s129
        %s131 = sand.u32 %s40, 1
        %s132 = smul.addr %s131, 8
        %s133 = scalar_lea.vmem [#allocation2], %s132
        // Predicated region
        $region25: #{tpu_custom_call.1} parent=23 // pred_check
          %p134 = pneg %p53
        $region26: #{tpu_custom_call.1} parent=23 // pred_check_branch
          %136 = sbr.rel (%p134) target = $region28
        $region27: #{tpu_custom_call.1} parent=23 // pred_region
          %138 = dma.done %s130, 128
        $region28: #{tpu_custom_call.1} parent=23 // pred_fallthru
          _
        %s139 = sand.u32 %s40, 1
        %s140 = scalar_lea.sflag [#allocation3], %s139
        %s141 = sand.u32 %s40, 1
        %s142 = smul.addr %s141, 8
        %s143 = scalar_lea.vmem [#allocation2], %s142
        %p144 = pneg %p53
        %p145 = pneg %p50
        %p146 = pneg %p81
        %p147 = pneg %p78
        %s148 = sand.u32 %s68, 1
        %s149 = scalar_lea.sflag [#allocation4], %s148
        %s150 = sand.u32 %s68, 1
        %s151 = smul.addr %s150, 8
        %s152 = scalar_lea.vmem [#allocation5], %s151
        %s153 = smul.u32 2, %s23
        %s154 = smul.u32 2, %s23
        %v155 = vld [vmem:[%s133] sm:$0xff]
        %v156 = vlaneseq
        %v157 = vshrl.u32 %v156, 7
        %vm158 = vcmp.lt.s32.totalorder %v157, 3
        %v159 = vsub.f32 0.0, %v155
        %v160 = vmul.f32 %v159, 1.442695
        %v161 = vpow.pop %v160
        %v162 = vadd.f32 %v161, 1.0
        %v163 = vrcp.pop %v162
        %v164 = vmul.f32 %v162, %v163
        %v165 = vsub.f32 1.0, %v164
        %v166 = vmul.f32 %v163, %v165
        %v167 = vadd.f32 %v163, %v166
        %vm168 = vweird.f32 %v162
        %vm169 = vweird.f32 %v163
        %vm170 = vmor %vm168, %vm169
        %v171 = vsel %vm170, %v163, %v167
        %v172 = vand.u32 2147483647, %v162
        %vm173 = vcmp.eq.f32.partialorder %v172, 8.507059e+37
        %v174 = vand.u32 %v162, 2147483648
        %v175 = vor.u32 1.1754944e-38, %v174
        %v176 = vsel %vm173, %v175, %v171
        %v177 = vmul.f32 1.0, %v176
        %179 = vst [vmem:[#allocation1] ss:$2 sm:$0xff] %v177
        %v180 = vld.sshfl [vmem:[#allocation1] sm:$0xff pattern:$0x75316420]
        %v181 = vld.sshfl [vmem:[#allocation1 + $0x8] sm:$0xff pattern:$0x75316420]
        %185 = vst [vmem:[#allocation1] ss:$2 sm:$0xff] %v155
        %v186 = vld.sshfl [vmem:[#allocation1] sm:$0xff pattern:$0x75316420]
        %v187 = vld.sshfl [vmem:[#allocation1 + $0x8] sm:$0xff pattern:$0x75316420]
        %v190 = vsel %vm158, %v180, %v186
        %v191 = vsel %vm158, %v181, %v187
        %v194 = vrot.slane %v191, 4
        %vm195 = vcmask 1043456
        %v196 = vsel %vm195, %v190, %v194
        %198 = vst [vmem:[%s152] sm:$0xff] %v196
        %s199 = sand.u32 %s68, 1
        %s200 = scalar_lea.sflag [#allocation4], %s199
        %s201 = sand.u32 %s68, 1
        %s202 = smul.addr %s201, 8
        %s203 = scalar_lea.vmem [#allocation5], %s202
        // Predicated region
        $region29: #{tpu_custom_call.1} parent=23 // pred_check
          %p204 = pneg %p78
        $region30: #{tpu_custom_call.1} parent=23 // pred_check_branch
          %206 = sbr.rel (%p204) target = $region32
        $region31: #{tpu_custom_call.1} parent=23 // pred_region
          %s207 = smul.u32 2, %s23
          %209 = vsyncadd %s200, 0
          %s210 = smul.addr %s22, 2
          %s211 = sadd.s32 %s207, %s210
          %s212 = smul.addr %s211, 4
          %s213 = scalar_lea.hbm %s1, %s212
          %s215 = sshll.u32 %s203, 4
          %s216 = int_to_ptr.vmem [resolvable:$true] %s215
          %s217 = sshll.u32 %s213, 4
          %s218 = int_to_ptr.hbm [resolvable:$true] %s217
          %220 = dma.vmem_to_hbm [thread:$0]  %s216, 128, %s218, %s200
        $region32: #{tpu_custom_call.1} parent=23 // pred_fallthru
          _
      $region24: #{tpu_custom_call.1} parent=5 // pred_fallthru
        _
      %p221 = scmp.le.s32.totalorder 2, %s13
      // Predicated region
      $region33: #{tpu_custom_call.1} parent=5 // pred_check
        %p222 = pneg %p221
      $region34: #{tpu_custom_call.1} parent=5 // pred_check_branch
        %224 = sbr.rel (%p222) target = $region36
      $region35: #{tpu_custom_call.1} parent=5 // pred_region
        %s225 = ssub.s32 %s13, 2
        // Predicated region
        $region37: #{tpu_custom_call.1} parent=35 // pred_check
          %p226 = pneg %p84
        $region38: #{tpu_custom_call.1} parent=35 // pred_check_branch
          %228 = sbr.rel (%p226) target = $region40
        $region39: #{tpu_custom_call.1} parent=35 // pred_region
          %s229 = sand.u32 %s69, 1
          %s230 = scalar_lea.sflag [#allocation4], %s229
          %s231 = sand.u32 %s69, 1
          %s232 = smul.addr %s231, 8
          %s233 = scalar_lea.vmem [#allocation5], %s232
          %235 = dma.done %s230, 128
        $region40: #{tpu_custom_call.1} parent=35 // pred_fallthru
          _
      $region36: #{tpu_custom_call.1} parent=5 // pred_fallthru
        _
    $region6: #{tpu_custom_call.1} parent=1 // loop_footer
      %s17 = sadd.s32 1, %s13
    $region7: #{tpu_custom_call.1} parent=1 // loop_footer_branch
      %12 = sbr.rel target = $region3
    $region8: #{tpu_custom_call.1} parent=1 // loop_exit
      _
    %236 = vsyncpa [#allocation3], 1
    %s237 = scalar_lea.sflag [#allocation3], 1
    %238 = vsyncpa %s237, 1
    %239 = vsyncpa [#allocation4], 1
    %s240 = scalar_lea.sflag [#allocation4], 1
    %241 = vsyncpa %s240, 1

</llo_original>
